<compile_context>
chip_gen: v7x
topology: tpu7x:2x2x1
jax: 0.10.0
libtpu: 0.0.40
codegen_flags: <defaults>
</compile_context>

<pallas_src>
import functools
import math

import jax
import jax.numpy as jnp
from jax.experimental import pallas as pl
from jax.experimental.pallas import tpu as pltpu

# ---------------- small synthetic config (ViT-base scaled down) ----------------
B = 2          # batch
F_DIM = 8      # input_fdim   (real: 128)
T_DIM = 64     # input_tdim   (real: 998)
PS = 4         # patch_size == fstride == tstride (real: 16)
D = 32         # embed dim    (real: 768)
H = 4          # heads        (real: 12)
HD = D // H    # head dim
DEPTH = 2      # blocks       (real: 12)
MLP = 4 * D    # mlp hidden
POOL = 8       # nn.AvgPool1d(8, 8)
LN_EPS = 1e-6
MM_DTYPE = jnp.bfloat16   # matmul operand dtype (f32 accumulation everywhere)
ROW_TILE = 512            # M-tile cap (multiple of 8) for row-tiled matmul kernels


# ------------------------------- Pallas kernels --------------------------------
def _fused_matmul_kernel(*refs, ln, residual, activation, eps):
    """[LayerNorm ->] x @ W + b [-> GELU] [-> + residual], row-tiled over M."""
    it = iter(refs)
    x_ref = next(it)
    if ln:
        g_ref = next(it)
        be_ref = next(it)
    w_ref = next(it)
    bias_ref = next(it)
    r_ref = next(it) if residual else None
    o_ref = next(it)

    x = x_ref[...]
    if ln:
        mean = jnp.mean(x, axis=-1, keepdims=True)
        xc = x - mean
        var = jnp.mean(xc * xc, axis=-1, keepdims=True)
        x = xc * jax.lax.rsqrt(var + eps) * g_ref[...] + be_ref[...]
    w = w_ref[...]
    y = jnp.dot(x.astype(w.dtype), w, preferred_element_type=jnp.float32)
    y = y + bias_ref[...]
    if activation == "gelu":
        # exact (erf) GELU, as in torch.nn.GELU default (kept in f32)
        y = 0.5 * y * (1.0 + jax.lax.erf(y * (1.0 / math.sqrt(2.0))))
    if residual:
        y = y + r_ref[...]
    o_ref[...] = y


def fused_matmul(x, w, bias, *, ln_params=None, residual=None, activation=None):
    M, K = x.shape
    K2, N = w.shape
    assert K == K2
    TM = M if M <= ROW_TILE else ROW_TILE   # full dim (small M) or 8-aligned tile
    grid = (pl.cdiv(M, TM),)

    x_spec = pl.BlockSpec((TM, K), lambda i: (i, 0))
    w_spec = pl.BlockSpec((K, N), lambda i: (0, 0))       # weights resident in VMEM
    bias_spec = pl.BlockSpec((1, N), lambda i: (0, 0))
    lnvec_spec = pl.BlockSpec((1, K), lambda i: (0, 0))
    out_spec = pl.BlockSpec((TM, N), lambda i: (i, 0))

    inputs = [x]
    in_specs = [x_spec]
    if ln_params is not None:
        g, be = ln_params
        inputs += [g.reshape(1, K), be.reshape(1, K)]
        in_specs += [lnvec_spec, lnvec_spec]
    inputs += [w, bias.reshape(1, N)]
    in_specs += [w_spec, bias_spec]
    if residual is not None:
        inputs.append(residual)
        in_specs.append(out_spec)

    kernel = functools.partial(
        _fused_matmul_kernel,
        ln=ln_params is not None,
        residual=residual is not None,
        activation=activation,
        eps=LN_EPS,
    )
    return pl.pallas_call(
        kernel,
        out_shape=jax.ShapeDtypeStruct((M, N), jnp.float32),
        grid=grid,
        in_specs=in_specs,
        out_specs=out_spec,
        compiler_params=pltpu.CompilerParams(dimension_semantics=("parallel",)),
    )(*inputs)


def _attention_kernel(qkv_ref, o_ref, *, heads, scale, dot_dtype):
    """Per-batch multi-head attention; heads split with static column slices,
    output written as one lane-dense (S, D) slab."""
    qkv = qkv_ref[0]                       # (S, 3D) f32
    three_d = qkv.shape[-1]
    d_model = three_d // 3
    hd = d_model // heads
    outs = []
    for h in range(heads):
        q = (qkv[:, h * hd:(h + 1) * hd] * scale).astype(dot_dtype)
        k = qkv[:, d_model + h * hd:d_model + (h + 1) * hd].astype(dot_dtype)
        v = qkv[:, 2 * d_model + h * hd:2 * d_model + (h + 1) * hd].astype(dot_dtype)
        s = jax.lax.dot_general(q, k, (((1,), (1,)), ((), ())),
                                preferred_element_type=jnp.float32)   # (S, S)
        s = s - jnp.max(s, axis=-1, keepdims=True)
        p = jnp.exp(s)
        inv = pl.reciprocal(jnp.sum(p, axis=-1, keepdims=True), approx=True)
        p = p * inv
        outs.append(jnp.dot(p.astype(dot_dtype), v,
                            preferred_element_type=jnp.float32))      # (S, hd)
    o_ref[0] = jnp.concatenate(outs, axis=-1)                         # (S, D)


def attention(qkv, heads):
    Bn, S, three_d = qkv.shape
    d_model = three_d // 3
    scale = 1.0 / math.sqrt(d_model // heads)
    return pl.pallas_call(
        functools.partial(_attention_kernel, heads=heads, scale=scale,
                          dot_dtype=MM_DTYPE),
        out_shape=jax.ShapeDtypeStruct((Bn, S, d_model), jnp.float32),
        grid=(Bn,),
        in_specs=[pl.BlockSpec((1, S, three_d), lambda i: (i, 0, 0))],
        out_specs=pl.BlockSpec((1, S, d_model), lambda i: (i, 0, 0)),
        compiler_params=pltpu.CompilerParams(dimension_semantics=("parallel",)),
    )(qkv)


def _norm_pool_kernel(x_ref, g_ref, b_ref, o_ref, *, pool, eps):
    """Final LayerNorm + drop-cls + AvgPool1d(pool, pool) over tokens, as a matmul."""
    x = x_ref[0]                                   # (S, D), row 0 is the cls token
    mean = jnp.mean(x, axis=-1, keepdims=True)
    xc = x - mean
    var = jnp.mean(xc * xc, axis=-1, keepdims=True)
    xn = xc * jax.lax.rsqrt(var + eps) * g_ref[...] + b_ref[...]
    S = x.shape[0]
    No = o_ref.shape[1]
    rows = jax.lax.broadcasted_iota(jnp.int32, (No, S), 0)
    cols = jax.lax.broadcasted_iota(jnp.int32, (No, S), 1)
    # pooling matrix skips the cls token (col 0) and averages groups of `pool`
    a = jnp.where((cols >= 1) & ((cols - 1) // pool == rows),
                  jnp.float32(1.0 / pool), jnp.float32(0.0))
    o_ref[0] = jnp.dot(a, xn, preferred_element_type=jnp.float32)     # (No, D)


def final_norm_pool(xs, gamma, beta, pool):
    Bn, S, Dm = xs.shape
    No = (S - 1) // pool
    return pl.pallas_call(
        functools.partial(_norm_pool_kernel, pool=pool, eps=LN_EPS),
        out_shape=jax.ShapeDtypeStruct((Bn, No, Dm), jnp.float32),
        grid=(Bn,),
        in_specs=[pl.BlockSpec((1, S, Dm), lambda i: (i, 0, 0)),
                  pl.BlockSpec((1, Dm), lambda i: (0, 0)),
                  pl.BlockSpec((1, Dm), lambda i: (0, 0))],
        out_specs=pl.BlockSpec((1, No, Dm), lambda i: (i, 0, 0)),
        compiler_params=pltpu.CompilerParams(dimension_semantics=("parallel",)),
    )(xs, gamma.reshape(1, Dm), beta.reshape(1, Dm))


# ------------------------------ parameter init ---------------------------------
def init_params(key):
    def nrm(k, shape, scale=0.02, dtype=MM_DTYPE):
        return (scale * jax.random.normal(k, shape, dtype=jnp.float32)).astype(dtype)

    keys = iter(jax.random.split(key, 64))
    p = {
        "patch_w": nrm(next(keys), (PS * PS, D)),     # conv (D,1,PS,PS) flattened
        "patch_b": jnp.zeros((D,), jnp.float32),
        "cls": nrm(next(keys), (1, 1, D), dtype=jnp.float32),
        "pos": nrm(next(keys), (1, (F_DIM // PS) * (T_DIM // PS) + 1, D),
                   dtype=jnp.float32),
        "nf_g": jnp.ones((D,), jnp.float32),
        "nf_b": jnp.zeros((D,), jnp.float32),
        "blocks": [],
    }
    for _ in range(DEPTH):
        blk = {
            "n1_g": jnp.ones((D,), jnp.float32),
            "n1_b": jnp.zeros((D,), jnp.float32),
            "qkv_w": nrm(next(keys), (D, 3 * D)),
            "qkv_b": jnp.zeros((3 * D,), jnp.float32),
            "proj_w": nrm(next(keys), (D, D)),
            "proj_b": jnp.zeros((D,), jnp.float32),
            "n2_g": jnp.ones((D,), jnp.float32),
            "n2_b": jnp.zeros((D,), jnp.float32),
            "fc1_w": nrm(next(keys), (D, MLP)),
            "fc1_b": jnp.zeros((MLP,), jnp.float32),
            "fc2_w": nrm(next(keys), (MLP, D)),
            "fc2_b": jnp.zeros((D,), jnp.float32),
        }
        p["blocks"].append(blk)
    return p


# --------------------------------- forward -------------------------------------
def asit_forward(asit_feat, params):
    """asit_feat: (B, T, F) spectrogram. Returns (B, N//POOL, D)."""
    Bn, T, F = asit_feat.shape
    # AST: x.unsqueeze(1).transpose(2,3) -> (B, 1, F, T); conv stride==kernel ==>
    # patch extraction is a reshape; the conv2d becomes a matmul (Pallas kernel).
    x = jnp.transpose(asit_feat, (0, 2, 1))                       # (B, F, T)
    Fp, Tp = F // PS, T // PS
    # TODO(synk): at real patch size, fold this patch gather into the patch-embed
    # BlockSpec index_map (pl.Element / strided blocks) instead of a JAX transpose.
    patches = (
        x.reshape(Bn, Fp, PS, Tp, PS)
        .transpose(0, 1, 3, 2, 4)                                 # (B, Fp, Tp, PS, PS)
        .reshape(Bn * Fp * Tp, PS * PS)
    )
    tok = fused_matmul(patches, params["patch_w"], params["patch_b"])   # (B*N, D)
    N = Fp * Tp
    tok = tok.reshape(Bn, N, D)

    cls = jnp.broadcast_to(params["cls"], (Bn, 1, D))
    xs = jnp.concatenate([cls, tok], axis=1) + params["pos"]      # (B, S, D)
    S = N + 1
    xs2 = xs.reshape(Bn * S, D)

    for blk in params["blocks"]:
        # --- attention: LN1 fused into qkv; heads split in-kernel; residual in proj ---
        qkv = fused_matmul(xs2, blk["qkv_w"], blk["qkv_b"],
                           ln_params=(blk["n1_g"], blk["n1_b"]))        # (B*S, 3D)
        o = attention(qkv.reshape(Bn, S, 3 * D), H).reshape(Bn * S, D)  # (B*S, D)
        xs2 = fused_matmul(o, blk["proj_w"], blk["proj_b"], residual=xs2)
        # --- MLP: LN2 + GELU fused into fc1; residual fused into fc2 ---
        h = fused_matmul(xs2, blk["fc1_w"], blk["fc1_b"],
                         ln_params=(blk["n2_g"], blk["n2_b"]),
                         activation="gelu")                              # (B*S, MLP)
        xs2 = fused_matmul(h, blk["fc2_w"], blk["fc2_b"], residual=xs2)

    # feat_mean: final LayerNorm, drop cls token, AvgPool1d(8,8) over tokens — fused.
    pooled = final_norm_pool(xs2.reshape(Bn, S, D),
                             params["nf_g"], params["nf_b"], POOL)       # (B, N//8, D)
    return pooled


# ----------------------------------- main ---------------------------------------
if __name__ == "__main__":
    key = jax.random.PRNGKey(0)
    k_in, k_par = jax.random.split(key)
    asit_feat = jax.random.normal(k_in, (B, T_DIM, F_DIM), dtype=jnp.float32)
    params = init_params(k_par)

    out = asit_forward(asit_feat, params)
    out = jax.block_until_ready(out)

    expected_tokens = (F_DIM // PS) * (T_DIM // PS) // POOL
    assert out.shape == (B, expected_tokens, D), out.shape
    assert bool(jnp.isfinite(out).all())
    print("KERNEL_OK")
</pallas_src>

<mosaic_0001>
module attributes {stable_mosaic.version = 11 : i64} {
  func.func @_fused_matmul_kernel(%arg0: i32, %arg1: memref<64x16xf32, #tpu.memory_space<vmem>>, %arg2: memref<16x32xbf16, #tpu.memory_space<vmem>>, %arg3: memref<1x32xf32, #tpu.memory_space<vmem>>, %arg4: memref<64x32xf32, #tpu.memory_space<vmem>>) attributes {dimension_semantics = [#tpu.dimension_semantics<parallel>], iteration_bounds = array<i64: 1>, scalar_prefetch = 0 : i64, scratch_operands = 0 : i64, tpu.core_type = #tpu.core_type<tc>, window_params = [{transform_indices = @transform_0, window_bounds = array<i64: 64, 16>}, {pipeline_mode = #tpu.pipeline_mode<synchronous>, transform_indices = @transform_1, window_bounds = array<i64: 16, 32>}, {pipeline_mode = #tpu.pipeline_mode<synchronous>, transform_indices = @transform_2, window_bounds = array<i64: 1, 32>}, {transform_indices = @transform_3, window_bounds = array<i64: 64, 32>}]} {
    %c0 = arith.constant 0 : index
    %c0_0 = arith.constant 0 : index
    %0 = vector.load %arg1[%c0, %c0_0] : memref<64x16xf32, #tpu.memory_space<vmem>>, vector<64x16xf32>
    %c0_1 = arith.constant 0 : index
    %c0_2 = arith.constant 0 : index
    %1 = vector.load %arg2[%c0_1, %c0_2] : memref<16x32xbf16, #tpu.memory_space<vmem>>, vector<16x32xbf16>
    %2 = arith.truncf %0 : vector<64x16xf32> to vector<64x16xbf16>
    %cst = arith.constant dense<0.000000e+00> : vector<64x32xf32>
    %3 = tpu.matmul %2, %1, %cst {dimension_numbers = #tpu.dot_dimension_numbers<[1], [0], [0], [1], [0, 0, 1, 1], [], []>} : vector<64x16xbf16>, vector<16x32xbf16>, vector<64x32xf32> -> vector<64x32xf32>
    %c0_3 = arith.constant 0 : index
    %c0_4 = arith.constant 0 : index
    %4 = vector.load %arg3[%c0_3, %c0_4] : memref<1x32xf32, #tpu.memory_space<vmem>>, vector<1x32xf32>
    %5 = vector.broadcast %4 : vector<1x32xf32> to vector<64x32xf32>
    %6 = arith.addf %3, %5 : vector<64x32xf32>
    %c0_5 = arith.constant 0 : index
    %c0_6 = arith.constant 0 : index
    %7 = vector.load %arg4[%c0_5, %c0_6] : memref<64x32xf32, #tpu.memory_space<vmem>>, vector<64x32xf32>
    tpu.vector_store %arg4[%c0_5, %c0_6], %6 {strides = array<i32>} : memref<64x32xf32, #tpu.memory_space<vmem>>, vector<64x32xf32>,
    return
  }
  func.func @transform_0(%arg0: i32) -> (i32, i32) {
    %c0_i32 = arith.constant 0 : i32
    %c0_i32_0 = arith.constant 0 : i32
    return %arg0, %c0_i32 : i32, i32
  }
  func.func @transform_1(%arg0: i32) -> (i32, i32) {
    %c0_i32 = arith.constant 0 : i32
    %c0_i32_0 = arith.constant 0 : i32
    %c0_i32_1 = arith.constant 0 : i32
    return %c0_i32, %c0_i32_0 : i32, i32
  }
  func.func @transform_2(%arg0: i32) -> (i32, i32) {
    %c0_i32 = arith.constant 0 : i32
    %c0_i32_0 = arith.constant 0 : i32
    %c0_i32_1 = arith.constant 0 : i32
    return %c0_i32, %c0_i32_0 : i32, i32
  }
  func.func @transform_3(%arg0: i32) -> (i32, i32) {
    %c0_i32 = arith.constant 0 : i32
    %c0_i32_0 = arith.constant 0 : i32
    return %arg0, %c0_i32 : i32, i32
  }
}

</mosaic_0001>

<llo_original>
// kernel: tpu_custom_call.1
$region0: #{tpu_custom_call.1}
  #allocation0 [shape = 'u32[]', space=smem, size = 0x4, offset = 0x4, fixed_abs, tag = 'smem constant byte address 0x4 - core index']
  #allocation1 [shape = 'u32[144,128]{1,0:T(1,128)}', space=vmem, size = 0x12000, scoped, tag = 'internal scratch']
  %s0 = inlined_call_operand.vmem [shape: f32[64,16], index: 0, kind: input, shape index: {}]
  %s1 = inlined_call_operand.vmem [shape: bf16[16,32], index: 1, kind: input, shape index: {}]
  %s2 = inlined_call_operand.vmem [shape: f32[1,32], index: 2, kind: input, shape index: {}]
  %s3 = inlined_call_operand.vmem [shape: f32[64,32], index: 3, kind: output, shape index: {}]
  %s4 = sld [smem:[#allocation0]]
  $region22: #{tpu_custom_call.1} parent=0
    _
  %s6 = ssub.s32 1, %s4
  %s7 = scalar_select 0, %s6, %s4
  // Predicated region
  $region2: #{tpu_custom_call.1} parent=0 // pred_check
    _
  $region3: #{tpu_custom_call.1} parent=0 // pred_check_branch
    %9 = sbr.rel (0) target = $region5
  $region4: #{tpu_custom_call.1} parent=0 // pred_region
    _
  $region5: #{tpu_custom_call.1} parent=0 // pred_fallthru
    _
  // Predicated region
  $region6: #{tpu_custom_call.1} parent=0 // pred_check
    _
  $region7: #{tpu_custom_call.1} parent=0 // pred_check_branch
    %11 = sbr.rel (0) target = $region9
  $region8: #{tpu_custom_call.1} parent=0 // pred_region
    _
  $region9: #{tpu_custom_call.1} parent=0 // pred_fallthru
    _
  // Predicated region
  $region10: #{tpu_custom_call.1} parent=0 // pred_check
    _
  $region11: #{tpu_custom_call.1} parent=0 // pred_check_branch
    %13 = sbr.rel (0) target = $region13
  $region12: #{tpu_custom_call.1} parent=0 // pred_region
    _
  $region13: #{tpu_custom_call.1} parent=0 // pred_fallthru
    _
  %v15 = vld [vmem:[%s0] sm:$0xff]
  %v16 = vld [vmem:[%s0 + $0x8] sm:$0xff]
  %v17 = vld [vmem:[%s0 + $0x10] sm:$0xff]
  %v18 = vld [vmem:[%s0 + $0x18] sm:$0xff]
  %v19 = vld [vmem:[%s0 + $0x20] sm:$0xff]
  %v20 = vld [vmem:[%s0 + $0x28] sm:$0xff]
  %v21 = vld [vmem:[%s0 + $0x30] sm:$0xff]
  %v22 = vld [vmem:[%s0 + $0x38] sm:$0xff]
  %v23 = vld [vmem:[%s1] sm:$0xf]
  %v24 = vld [vmem:[%s1 + $0x4] sm:$0xf]
  %v25 = vpack.c.bf16 %v16, %v15
  %v26 = vpack.c.bf16 %v18, %v17
  %v27 = vpack.c.bf16 %v20, %v19
  %v28 = vpack.c.bf16 %v22, %v21
  %v29 = vld [vmem:[%s2] sm:$0x1]
  %v31 = vlaneseq
  %v32 = vshrl.u32 %v31, 7
  %v33 = vsub.s32 0, %v32
  %v34 = vrot.slane %v29, %v33
  %v38 = vunpack.c.l.b16 %v23
  %v39 = vunpack.c.l.b16 %v24
  %v40 = vpack.c.b16 %v39, %v38
  %vm42 = vcmask 130048
  %v44 = vsel %vm42, %v25, 0
  %v47 = vsel %vm42, %v26, 0
  %v50 = vsel %vm42, %v27, 0
  %v53 = vsel %vm42, %v28, 0
  %55 = vmatprep.subr.bf16.mxu0 0
  %56 = vmatpush1.bf16.msra.mxu0 %v40
  %57 = vmatprep.subr.bf16.mxu0 0
  %58 = vmatpush1.bf16.msra.mxu0 0
  %59 = vmatprep.subr.bf16.mxu0 0
  %60 = vmatpush1.bf16.msra.mxu0 0
  %61 = vmatprep.subr.bf16.mxu0 0
  %62 = vmatpush1.bf16.msra.mxu0 0
  %63 = vmatprep.subr.bf16.mxu0 0
  %64 = vmatpush1.bf16.msra.mxu0 0
  %65 = vmatprep.subr.bf16.mxu0 0
  %66 = vmatpush1.bf16.msra.mxu0 0
  %67 = vmatprep.subr.bf16.mxu0 0
  %68 = vmatpush1.bf16.msra.mxu0 0
  %69 = vmatprep.subr.bf16.mxu0 0
  %70 = vmatpush1.bf16.msra.mxu0 0
  %71 = vmatprep.subr.bf16.mxu0 0
  %72 = vmatpush1.bf16.msra.mxu0 0
  %73 = vmatprep.subr.bf16.mxu0 0
  %74 = vmatpush1.bf16.msra.mxu0 0
  %75 = vmatprep.subr.bf16.mxu0 0
  %76 = vmatpush1.bf16.msra.mxu0 0
  %77 = vmatprep.subr.bf16.mxu0 0
  %78 = vmatpush1.bf16.msra.mxu0 0
  %79 = vmatprep.subr.bf16.mxu0 0
  %80 = vmatpush1.bf16.msra.mxu0 0
  %81 = vmatprep.subr.bf16.mxu0 0
  %82 = vmatpush1.bf16.msra.mxu0 0
  %83 = vmatprep.subr.bf16.mxu0 0
  %84 = vmatpush1.bf16.msra.mxu0 0
  %85 = vmatprep.subr.bf16.mxu0 0
  %86 = vmatpush1.bf16.msra.mxu0 0
  %87 = vmatprep.mubr.bf16.mxu0 0
  %88 = vmatmul.mubr.bf16.gmra.mrb[0].mxu0 %v44
  %v89 = vpop.f32.mrb[0].mxu0
  %v90 = vadd.f32 %v34, %v89
  %v91 = vpop.f32.mrb[0].mxu0
  %v92 = vpop.f32.mrb[0].mxu0
  %v93 = vadd.f32 %v34, %v92
  %v94 = vpop.f32.mrb[0].mxu0
  %95 = vmatprep.mubr.bf16.mxu0 0
  %96 = vmatmul.mubr.bf16.gmra.mrb[0].mxu0 %v47
  %v97 = vpop.f32.mrb[0].mxu0
  %v98 = vadd.f32 %v34, %v97
  %v99 = vpop.f32.mrb[0].mxu0
  %v100 = vpop.f32.mrb[0].mxu0
  %v101 = vadd.f32 %v34, %v100
  %v102 = vpop.f32.mrb[0].mxu0
  %103 = vmatprep.mubr.bf16.mxu0 0
  %104 = vmatmul.mubr.bf16.gmra.mrb[0].mxu0 %v50
  %v105 = vpop.f32.mrb[0].mxu0
  %v106 = vadd.f32 %v34, %v105
  %v107 = vpop.f32.mrb[0].mxu0
  %v108 = vpop.f32.mrb[0].mxu0
  %v109 = vadd.f32 %v34, %v108
  %v110 = vpop.f32.mrb[0].mxu0
  %111 = vmatprep.mubr.bf16.mxu0 0
  %112 = vmatmul.mubr.bf16.gmra.mrb[0].mxu0 %v53
  %v113 = vpop.f32.mrb[0].mxu0
  %v114 = vadd.f32 %v34, %v113
  %v115 = vpop.f32.mrb[0].mxu0
  %v116 = vpop.f32.mrb[0].mxu0
  %v117 = vadd.f32 %v34, %v116
  %v118 = vpop.f32.mrb[0].mxu0
  %119 = vdwg.mxu0
  %vm120 = vcmask 261120
  %121 = vst.msk [vmem:[%s3] sm:$0xff] %vm120, %v90
  %122 = vst.msk [vmem:[%s3 + $0x8] sm:$0xff] %vm120, %v93
  %123 = vst.msk [vmem:[%s3 + $0x10] sm:$0xff] %vm120, %v98
  %124 = vst.msk [vmem:[%s3 + $0x18] sm:$0xff] %vm120, %v101
  %125 = vst.msk [vmem:[%s3 + $0x20] sm:$0xff] %vm120, %v106
  %126 = vst.msk [vmem:[%s3 + $0x28] sm:$0xff] %vm120, %v109
  %127 = vst.msk [vmem:[%s3 + $0x30] sm:$0xff] %vm120, %v114
  %128 = vst.msk [vmem:[%s3 + $0x38] sm:$0xff] %vm120, %v117
  // Predicated region
  $region14: #{tpu_custom_call.1} parent=0 // pred_check
    _
  $region15: #{tpu_custom_call.1} parent=0 // pred_check_branch
    %130 = sbr.rel (0) target = $region17
  $region16: #{tpu_custom_call.1} parent=0 // pred_region
    _
  $region17: #{tpu_custom_call.1} parent=0 // pred_fallthru
    _
  // Predicated region
  $region18: #{tpu_custom_call.1} parent=0 // pred_check
    _
  $region19: #{tpu_custom_call.1} parent=0 // pred_check_branch
    %132 = sbr.rel (0) target = $region21
  $region20: #{tpu_custom_call.1} parent=0 // pred_region
    _
  $region21: #{tpu_custom_call.1} parent=0 // pred_fallthru
    _

</llo_original>
